<compile_context>
chip_gen: v6e
topology: v6e:2x2x1
jax: 0.10.0
libtpu: 0.0.40
codegen_flags: <defaults>
</compile_context>

<pallas_src>
import functools

import jax
import jax.numpy as jnp
from jax.experimental import pallas as pl
from jax.experimental.pallas import tpu as pltpu


def _round_up(x, m):
    return ((x + m - 1) // m) * m


# ---------------------------------------------------------------------------
# Kernel
# ---------------------------------------------------------------------------
def affine_coupling_kernel(
    x_ref, ldj_ref,            # batch-tiled: (TB, D) f32, (1, TB) f32 (lane-dense)
    w1_ref, b1_ref,            # fused layer 1: (D, 2H) mm-dtype, (1, 2H) f32
    w2_ref, b2_ref,            # fused layer 2: (2H, 2D) mm-dtype, (1, 2D) f32
    y_ref, ldj_out_ref,        # batch-tiled outputs: (TB, D) f32, (1, TB) f32
    *, dt, inverse, matmul_dtype,
):
    x = x_ref[...]                                            # (TB, D) f32
    d = x.shape[-1]

    # Fused MLP for both branches. Mask already folded into the weights, so
    # layer 1 consumes raw x directly (== (x * (1-mask)) @ W1_orig).
    # Operands cast to matmul_dtype (bf16 by default) for full-rate MXU;
    # accumulation is f32.
    h = jnp.dot(x.astype(matmul_dtype), w1_ref[...],
                preferred_element_type=jnp.float32) + b1_ref[...]
    h = jnp.maximum(h, 0.0)                                   # (TB, 2H) f32
    z = jnp.dot(h.astype(matmul_dtype), w2_ref[...],
                preferred_element_type=jnp.float32) + b2_ref[...]   # (TB, 2D)

    # z[:, :d] == mask * scale_net(x*(1-mask));  z[:, d:] == mask*trans_net(...)*dt
    # NOTE: copy-free only when D is a multiple of 128 (it is here).
    s = jnp.tanh(z[:, :d]) * dt                               # (TB, D) f32
    t = z[:, d:]                                              # (TB, D) f32

    # Lane-dense row-sum of s, shape (1, TB): ones(1,D) contracted against the
    # last dim of s (== ones @ s^T on the MXU) — avoids a lane-sparse (TB, 1)
    # reduce + masked partial stores on the ldj path.
    ones_d = jnp.ones((1, d), jnp.float32)
    s_sum = jax.lax.dot_general(ones_d, s, (((1,), (1,)), ((), ())),
                                preferred_element_type=jnp.float32)  # (1, TB)

    if inverse:
        ldj_out_ref[...] = ldj_ref[...] - s_sum
        y_ref[...] = x * jnp.exp(-s) - t
    else:
        ldj_out_ref[...] = ldj_ref[...] + s_sum
        y_ref[...] = (x + t) * jnp.exp(s)


# ---------------------------------------------------------------------------
# One-time parameter fusion (mask / dt folded into static weights)
# ---------------------------------------------------------------------------
def fuse_params(params, mask, dt, matmul_dtype=jnp.bfloat16):
    (w1s, b1s, w2s, b2s, w1t, b1t, w2t, b2t) = params
    mask = mask.reshape(-1).astype(jnp.float32)               # (D,), strictly {0,1}
    _, h = w1s.shape
    d_out = w2s.shape[1]

    keep = (1.0 - mask)[:, None]                              # (D, 1)
    w1 = jnp.concatenate([w1s * keep, w1t * keep], axis=1)    # (D, 2H)
    b1 = jnp.concatenate([b1s, b1t], axis=1).astype(jnp.float32)   # (1, 2H)

    col_s = mask[None, :]                                     # (1, D)
    col_t = (mask * float(dt))[None, :]                       # (1, D)
    # Block-diagonal layer 2: one wide MXU pass for both branches (best on
    # v6e/v7x 256-native MXU).  On v5e with 2H >= 256 splitting into two
    # (TB,H)x(H,D) matmuls avoids streaming the zero blocks — not done here.
    w2 = jnp.zeros((2 * h, 2 * d_out), jnp.float32)
    w2 = w2.at[:h, :d_out].set(w2s * col_s)
    w2 = w2.at[h:, d_out:].set(w2t * col_t)                   # (2H, 2D)
    b2 = jnp.concatenate([b2s * col_s, b2t * col_t], axis=1).astype(jnp.float32)
    return w1.astype(matmul_dtype), b1, w2.astype(matmul_dtype), b2


# ---------------------------------------------------------------------------
# Wrapper
# ---------------------------------------------------------------------------
def affine_coupling(x, mask, log_det_jac, params, *, dt=1.0, inverse=False,
                    block_b=2048, matmul_dtype=jnp.bfloat16,
                    min_batch_for_split=1024):
    """x: (B, D) f32, mask: (D,) binary f32, log_det_jac: (B,) f32."""
    B, D = x.shape
    w1, b1, w2, b2 = fuse_params(params, mask, dt, matmul_dtype)
    h2 = w1.shape[1]          # 2H
    d2 = w2.shape[1]          # 2D

    # ---- batch tiling -----------------------------------------------------
    # Big tiles amortize the ~0.35us per-grid-step overhead; cap per-step VMEM
    # for large D.  Force >=2 grid steps when there is enough work so the
    # "parallel" grid axis shards across v7x's 2 TensorCores.  In the
    # multi-step case tb is a multiple of 128 so the lane-dense (1, tb) ldj
    # blocks satisfy the (8,128) tiling rule; tiles are sized from ceil(B/n)
    # so padding waste stays small for arbitrary B.
    max_tb = min(block_b, max(128, (4 * 1024 * 1024) // (D * 4)))
    if B > max_tb or B >= min_batch_for_split:
        n_steps = max(2, pl.cdiv(B, max_tb))
        tb = _round_up(pl.cdiv(B, n_steps), 128)
    else:
        n_steps = 1
        tb = _round_up(B, 8)
    b_pad = n_steps * tb

    x_p = x.astype(jnp.float32)
    ldj_p = log_det_jac.reshape(1, B).astype(jnp.float32)
    if b_pad != B:
        pad = b_pad - B
        x_p = jnp.pad(x_p, ((0, pad), (0, 0)))
        ldj_p = jnp.pad(ldj_p, ((0, 0), (0, pad)))

    kernel = functools.partial(
        affine_coupling_kernel, dt=float(dt), inverse=bool(inverse),
        matmul_dtype=matmul_dtype)

    grid_spec = pltpu.PrefetchScalarGridSpec(
        num_scalar_prefetch=0,
        grid=(n_steps,),
        in_specs=[
            pl.BlockSpec((tb, D), lambda i: (i, 0)),          # x   (batch-tiled)
            pl.BlockSpec((1, tb), lambda i: (0, i)),          # ldj (lane-dense)
            pl.BlockSpec((D, h2), lambda i: (0, 0)),          # W1  (VMEM-resident)
            pl.BlockSpec((1, h2), lambda i: (0, 0)),          # b1
            pl.BlockSpec((w2.shape[0], d2), lambda i: (0, 0)),  # W2
            pl.BlockSpec((1, d2), lambda i: (0, 0)),          # b2
        ],
        out_specs=(
            pl.BlockSpec((tb, D), lambda i: (i, 0)),          # y
            pl.BlockSpec((1, tb), lambda i: (0, i)),          # ldj out
        ),
    )

    w_itemsize = jnp.dtype(matmul_dtype).itemsize
    cost = pl.CostEstimate(
        flops=2 * b_pad * (D * h2 + h2 * d2 + D),
        transcendentals=2 * b_pad * D,                        # tanh + exp
        bytes_accessed=(2 * b_pad * D + 2 * b_pad) * 4
                       + (w1.size + w2.size) * w_itemsize
                       + (b1.size + b2.size) * 4,
    )

    y, ldj = pl.pallas_call(
        kernel,
        out_shape=(
            jax.ShapeDtypeStruct((b_pad, D), jnp.float32),
            jax.ShapeDtypeStruct((1, b_pad), jnp.float32),
        ),
        grid_spec=grid_spec,
        input_output_aliases={1: 1},                          # ldj in -> ldj out
        compiler_params=pltpu.CompilerParams(
            dimension_semantics=("parallel",),                # megacore on v7x
            vmem_limit_bytes=32 * 1024 * 1024,                # safe on v5e/v6e/v7x
        ),
        cost_estimate=cost,
    )(x_p, ldj_p, w1, b1, w2, b2)

    return y[:B], ldj[0, :B]


# ---------------------------------------------------------------------------
# Parameters + pure-JAX reference (uses the RAW, unfused params)
# ---------------------------------------------------------------------------
def make_params(key, d, h):
    """2-layer MLP params for scale_net and trans_net, stored (in, out)."""
    ks = jax.random.split(key, 8)
    scale = 0.1
    w1s = scale * jax.random.normal(ks[0], (d, h), jnp.float32)
    b1s = scale * jax.random.normal(ks[1], (1, h), jnp.float32)
    w2s = scale * jax.random.normal(ks[2], (h, d), jnp.float32)
    b2s = scale * jax.random.normal(ks[3], (1, d), jnp.float32)
    w1t = scale * jax.random.normal(ks[4], (d, h), jnp.float32)
    b1t = scale * jax.random.normal(ks[5], (1, h), jnp.float32)
    w2t = scale * jax.random.normal(ks[6], (h, d), jnp.float32)
    b2t = scale * jax.random.normal(ks[7], (1, d), jnp.float32)
    return (w1s, b1s, w2s, b2s, w1t, b1t, w2t, b2t)


def affine_coupling_ref(x, mask, log_det_jac, params, *, dt=1.0, inverse=False):
    """Plain-JAX reference mirroring the PyTorch forward exactly (f32)."""
    (w1s, b1s, w2s, b2s, w1t, b1t, w2t, b2t) = params
    mask = mask.reshape(1, -1)
    xm = x * (1.0 - mask)
    s_raw = jnp.maximum(xm @ w1s + b1s, 0.0) @ w2s + b2s
    s = jnp.tanh(mask * s_raw) * dt
    t_raw = jnp.maximum(xm @ w1t + b1t, 0.0) @ w2t + b2t
    t = mask * t_raw * dt
    if inverse:
        ldj = log_det_jac - s.reshape(s.shape[0], -1).sum(-1)
        y = x * jnp.exp(-s) - t
    else:
        ldj = log_det_jac + s.reshape(s.shape[0], -1).sum(-1)
        y = (x + t) * jnp.exp(s)
    return y, ldj


if __name__ == "__main__":
    D, H = 128, 64
    dt = 0.5

    key = jax.random.PRNGKey(0)
    kx, kp, kx2 = jax.random.split(key, 3)
    mask = (jnp.arange(D) % 2).astype(jnp.float32)   # checkerboard binary mask
    params = make_params(kp, D, H)

    # ---- small single-tile case: forward + inverse -------------------------
    B = 8
    x = jax.random.normal(kx, (B, D), jnp.float32)
    ldj0 = jnp.zeros((B,), jnp.float32)

    y_ref, ldj_ref = affine_coupling_ref(x, mask, ldj0, params, dt=dt, inverse=False)
    yi_ref, ldji_ref = affine_coupling_ref(x, mask, ldj0, params, dt=dt, inverse=True)

    # Default bf16-MXU path (~1e-3 rel error vs f32 reference).
    y, ldj = affine_coupling(x, mask, ldj0, params, dt=dt, inverse=False)
    yi, ldji = affine_coupling(x, mask, ldj0, params, dt=dt, inverse=True)
    jax.block_until_ready((y, ldj, yi, ldji))
    assert jnp.allclose(y, y_ref, atol=5e-2, rtol=5e-2)
    assert jnp.allclose(ldj, ldj_ref, atol=1e-1, rtol=5e-2)
    assert jnp.allclose(yi, yi_ref, atol=5e-2, rtol=5e-2)
    assert jnp.allclose(ldji, ldji_ref, atol=1e-1, rtol=5e-2)

    # Exact f32 path.
    y32, ldj32 = affine_coupling(x, mask, ldj0, params, dt=dt, inverse=False,
                                 matmul_dtype=jnp.float32)
    jax.block_until_ready((y32, ldj32))
    assert jnp.allclose(y32, y_ref, atol=1e-5, rtol=1e-5)
    assert jnp.allclose(ldj32, ldj_ref, atol=1e-4, rtol=1e-4)

    # ---- multi-tile case: >=2 grid steps, padded remainder rows, lane-dense
    #      ldj blocks, input->output aliasing across blocks --------------------
    B2 = 300
    x2 = jax.random.normal(kx2, (B2, D), jnp.float32)
    ldj2 = jax.random.normal(kx, (B2,), jnp.float32)   # nonzero running ldj
    y2, ldj2o = affine_coupling(x2, mask, ldj2, params, dt=dt, inverse=False,
                                block_b=128)           # forces a 3-step grid
    jax.block_until_ready((y2, ldj2o))
    y2_ref, ldj2_ref = affine_coupling_ref(x2, mask, ldj2, params, dt=dt,
                                           inverse=False)
    assert jnp.allclose(y2, y2_ref, atol=5e-2, rtol=5e-2)
    assert jnp.allclose(ldj2o, ldj2_ref, atol=1e-1, rtol=5e-2)

    print("KERNEL_OK")
</pallas_src>

<mosaic_0001>
module attributes {stable_mosaic.version = 11 : i64} {
  func.func @affine_coupling_kernel(%arg0: i32, %arg1: memref<8x128xf32, #tpu.memory_space<vmem>>, %arg2: memref<1x8xf32, #tpu.memory_space<vmem>>, %arg3: memref<128x128xbf16, #tpu.memory_space<vmem>>, %arg4: memref<1x128xf32, #tpu.memory_space<vmem>>, %arg5: memref<128x256xbf16, #tpu.memory_space<vmem>>, %arg6: memref<1x256xf32, #tpu.memory_space<vmem>>, %arg7: memref<8x128xf32, #tpu.memory_space<vmem>>, %arg8: memref<1x8xf32, #tpu.memory_space<vmem>>) attributes {dimension_semantics = [#tpu.dimension_semantics<parallel>], iteration_bounds = array<i64: 1>, scalar_prefetch = 0 : i64, scratch_operands = 0 : i64, tpu.core_type = #tpu.core_type<tc>, window_params = [{transform_indices = @transform_0, window_bounds = array<i64: 8, 128>}, {transform_indices = @transform_1, window_bounds = array<i64: 1, 8>}, {pipeline_mode = #tpu.pipeline_mode<synchronous>, transform_indices = @transform_2, window_bounds = array<i64: 128, 128>}, {pipeline_mode = #tpu.pipeline_mode<synchronous>, transform_indices = @transform_3, window_bounds = array<i64: 1, 128>}, {pipeline_mode = #tpu.pipeline_mode<synchronous>, transform_indices = @transform_4, window_bounds = array<i64: 128, 256>}, {pipeline_mode = #tpu.pipeline_mode<synchronous>, transform_indices = @transform_5, window_bounds = array<i64: 1, 256>}, {transform_indices = @transform_6, window_bounds = array<i64: 8, 128>}, {transform_indices = @transform_7, window_bounds = array<i64: 1, 8>}]} {
    %c0 = arith.constant 0 : index
    %c0_0 = arith.constant 0 : index
    %0 = vector.load %arg1[%c0, %c0_0] : memref<8x128xf32, #tpu.memory_space<vmem>>, vector<8x128xf32>
    %1 = arith.truncf %0 : vector<8x128xf32> to vector<8x128xbf16>
    %c0_1 = arith.constant 0 : index
    %c0_2 = arith.constant 0 : index
    %2 = vector.load %arg3[%c0_1, %c0_2] : memref<128x128xbf16, #tpu.memory_space<vmem>>, vector<128x128xbf16>
    %cst = arith.constant dense<0.000000e+00> : vector<8x128xf32>
    %3 = tpu.matmul %1, %2, %cst {dimension_numbers = #tpu.dot_dimension_numbers<[1], [0], [0], [1], [0, 0, 1, 1], [], []>} : vector<8x128xbf16>, vector<128x128xbf16>, vector<8x128xf32> -> vector<8x128xf32>
    %c0_3 = arith.constant 0 : index
    %c0_4 = arith.constant 0 : index
    %4 = vector.load %arg4[%c0_3, %c0_4] : memref<1x128xf32, #tpu.memory_space<vmem>>, vector<1x128xf32>
    %5 = vector.broadcast %4 : vector<1x128xf32> to vector<8x128xf32>
    %6 = arith.addf %3, %5 : vector<8x128xf32>
    %cst_5 = arith.constant 0.000000e+00 : f32
    %7 = vector.broadcast %cst_5 : f32 to vector<8x128xf32>
    %8 = arith.maximumf %6, %7 : vector<8x128xf32>
    %9 = arith.truncf %8 : vector<8x128xf32> to vector<8x128xbf16>
    %c0_6 = arith.constant 0 : index
    %c0_7 = arith.constant 0 : index
    %10 = vector.load %arg5[%c0_6, %c0_7] : memref<128x256xbf16, #tpu.memory_space<vmem>>, vector<128x256xbf16>
    %cst_8 = arith.constant dense<0.000000e+00> : vector<8x256xf32>
    %11 = tpu.matmul %9, %10, %cst_8 {dimension_numbers = #tpu.dot_dimension_numbers<[1], [0], [0], [1], [0, 0, 1, 1], [], []>} : vector<8x128xbf16>, vector<128x256xbf16>, vector<8x256xf32> -> vector<8x256xf32>
    %c0_9 = arith.constant 0 : index
    %c0_10 = arith.constant 0 : index
    %12 = vector.load %arg6[%c0_9, %c0_10] : memref<1x256xf32, #tpu.memory_space<vmem>>, vector<1x256xf32>
    %13 = vector.broadcast %12 : vector<1x256xf32> to vector<8x256xf32>
    %14 = arith.addf %11, %13 : vector<8x256xf32>
    %15 = vector.extract_strided_slice %14 {offsets = [0, 0], sizes = [8, 128], strides = [1, 1]} : vector<8x256xf32> to vector<8x128xf32>
    %16 = math.tanh %15 : vector<8x128xf32>
    %cst_11 = arith.constant 5.000000e-01 : f32
    %17 = vector.broadcast %cst_11 : f32 to vector<8x128xf32>
    %18 = arith.mulf %16, %17 : vector<8x128xf32>
    %19 = vector.extract_strided_slice %14 {offsets = [0, 128], sizes = [8, 128], strides = [1, 1]} : vector<8x256xf32> to vector<8x128xf32>
    %cst_12 = arith.constant 1.000000e+00 : f32
    %20 = vector.broadcast %cst_12 : f32 to vector<1x128xf32>
    %cst_13 = arith.constant dense<0.000000e+00> : vector<1x8xf32>
    %21 = tpu.matmul %20, %18, %cst_13 {dimension_numbers = #tpu.dot_dimension_numbers<[1], [1], [0], [0], [0, 0, 1, 0], [], []>} : vector<1x128xf32>, vector<8x128xf32>, vector<1x8xf32> -> vector<1x8xf32>
    %c0_14 = arith.constant 0 : index
    %c0_15 = arith.constant 0 : index
    %22 = vector.load %arg2[%c0_14, %c0_15] : memref<1x8xf32, #tpu.memory_space<vmem>>, vector<1x8xf32>
    %23 = arith.addf %22, %21 : vector<1x8xf32>
    %c0_16 = arith.constant 0 : index
    %c0_17 = arith.constant 0 : index
    %24 = vector.load %arg8[%c0_16, %c0_17] : memref<1x8xf32, #tpu.memory_space<vmem>>, vector<1x8xf32>
    tpu.vector_store %arg8[%c0_16, %c0_17], %23 {strides = array<i32>} : memref<1x8xf32, #tpu.memory_space<vmem>>, vector<1x8xf32>,
    %25 = arith.addf %0, %19 : vector<8x128xf32>
    %26 = math.exp %18 : vector<8x128xf32>
    %27 = arith.mulf %25, %26 : vector<8x128xf32>
    %c0_18 = arith.constant 0 : index
    %c0_19 = arith.constant 0 : index
    %28 = vector.load %arg7[%c0_18, %c0_19] : memref<8x128xf32, #tpu.memory_space<vmem>>, vector<8x128xf32>
    tpu.vector_store %arg7[%c0_18, %c0_19], %27 {strides = array<i32>} : memref<8x128xf32, #tpu.memory_space<vmem>>, vector<8x128xf32>,
    return
  }
  func.func @transform_0(%arg0: i32) -> (i32, i32) {
    %c0_i32 = arith.constant 0 : i32
    %c0_i32_0 = arith.constant 0 : i32
    return %arg0, %c0_i32 : i32, i32
  }
  func.func @transform_1(%arg0: i32) -> (i32, i32) {
    %c0_i32 = arith.constant 0 : i32
    %c0_i32_0 = arith.constant 0 : i32
    return %c0_i32, %arg0 : i32, i32
  }
  func.func @transform_2(%arg0: i32) -> (i32, i32) {
    %c0_i32 = arith.constant 0 : i32
    %c0_i32_0 = arith.constant 0 : i32
    %c0_i32_1 = arith.constant 0 : i32
    return %c0_i32, %c0_i32_0 : i32, i32
  }
  func.func @transform_3(%arg0: i32) -> (i32, i32) {
    %c0_i32 = arith.constant 0 : i32
    %c0_i32_0 = arith.constant 0 : i32
    %c0_i32_1 = arith.constant 0 : i32
    return %c0_i32, %c0_i32_0 : i32, i32
  }
  func.func @transform_4(%arg0: i32) -> (i32, i32) {
    %c0_i32 = arith.constant 0 : i32
    %c0_i32_0 = arith.constant 0 : i32
    %c0_i32_1 = arith.constant 0 : i32
    return %c0_i32, %c0_i32_0 : i32, i32
  }
  func.func @transform_5(%arg0: i32) -> (i32, i32) {
    %c0_i32 = arith.constant 0 : i32
    %c0_i32_0 = arith.constant 0 : i32
    %c0_i32_1 = arith.constant 0 : i32
    return %c0_i32, %c0_i32_0 : i32, i32
  }
  func.func @transform_6(%arg0: i32) -> (i32, i32) {
    %c0_i32 = arith.constant 0 : i32
    %c0_i32_0 = arith.constant 0 : i32
    return %arg0, %c0_i32 : i32, i32
  }
  func.func @transform_7(%arg0: i32) -> (i32, i32) {
    %c0_i32 = arith.constant 0 : i32
    %c0_i32_0 = arith.constant 0 : i32
    return %c0_i32, %arg0 : i32, i32
  }
}

</mosaic_0001>

<llo_original>
// kernel: tpu_custom_call.1
$region0: #{tpu_custom_call.1}
  #allocation0 [shape = 'u32[]', space=smem, size = 0x4, offset = 0x4, fixed_abs, tag = 'smem constant byte address 0x4 - core index']
  #allocation1 [shape = 'u32[144,128]{1,0:T(1,128)}', space=vmem, size = 0x12000, scoped, tag = 'internal scratch']
  %s0 = inlined_call_operand.vmem [shape: f32[8,128], index: 0, kind: input, shape index: {}]
  %s1 = inlined_call_operand.hbm [shape: f32[1,8], index: 1, kind: input, shape index: {}, may-alias: {1,7}]
  %s2 = inlined_call_operand.hbm [shape: bf16[128,128], index: 2, kind: input, shape index: {}]
  %s3 = inlined_call_operand.hbm [shape: f32[1,128], index: 3, kind: input, shape index: {}]
  %s4 = inlined_call_operand.hbm [shape: bf16[128,256], index: 4, kind: input, shape index: {}]
  %s5 = inlined_call_operand.vmem [shape: f32[1,256], index: 5, kind: input, shape index: {}]
  %s6 = inlined_call_operand.hbm [shape: f32[8,128], index: 6, kind: output, shape index: {0}]
  %s7 = inlined_call_operand.hbm [shape: f32[1,8], index: 7, kind: output, shape index: {1}, may-alias: {1,7}]
  %8 = xla_tuple %s6, %s7
  %s9 = sld [smem:[#allocation0]]
  $region58: #{tpu_custom_call.1} parent=0
    _
  %s11 = ssub.s32 1, %s9
  %s12 = scalar_select 0, %s11, %s9
  $region1: #{tpu_custom_call.1} parent=0
    #allocation2 [shape = 'u8[512]{0}', space=vmem, size = 0x400, scoped, tag = 'input window, operand 1, single buffered']
    #allocation3 [shape = 's32[1]{0}', space=sflag, size = 0x4, scoped, tag = 'scoped memory for tpu_custom_call.1']
    #allocation4 [shape = 's32[1]{0}', space=sflag, size = 0x4, scoped, tag = 'scoped memory for tpu_custom_call.1']
    #allocation5 [shape = 'u8[32768]{0}', space=vmem, size = 0x8000, scoped, tag = 'input window, operand 2, single buffered']
    #allocation6 [shape = 's32[1]{0}', space=sflag, size = 0x4, scoped, tag = 'scoped memory for tpu_custom_call.1']
    #allocation7 [shape = 'u8[512]{0}', space=vmem, size = 0x400, scoped, tag = 'input window, operand 3, single buffered']
    #allocation8 [shape = 'u8[65536]{0}', space=vmem, size = 0x10000, scoped, tag = 'input window, operand 4, single buffered']
    #allocation9 [shape = 's32[1]{0}', space=sflag, size = 0x4, scoped, tag = 'scoped memory for tpu_custom_call.1']
    #allocation10 [shape = 'u8[4096]{0}', space=vmem, size = 0x1000, scoped, tag = 'output window, operand 0, single buffered']
    #allocation11 [shape = 'u8[512]{0}', space=vmem, size = 0x400, scoped, tag = 'output window, operand 1, single buffered']
    #allocation12 [shape = 's32[1]{0}', space=sflag, size = 0x4, scoped, tag = 'scoped memory for tpu_custom_call.1']
    %13 = vsyncpa [#allocation3], 0
    %14 = vsyncpa [#allocation6], 0
    %15 = vsyncpa [#allocation9], 0
    %16 = vsyncpa [#allocation4], 0
    %17 = vsyncpa [#allocation12], 0
    // Predicated region
    $region2: #{tpu_custom_call.1} parent=1 // pred_check
      _
    $region3: #{tpu_custom_call.1} parent=1 // pred_check_branch
      %19 = sbr.rel (0) target = $region5
    $region4: #{tpu_custom_call.1} parent=1 // pred_region
      _
    $region5: #{tpu_custom_call.1} parent=1 // pred_fallthru
      _
    // Predicated region
    $region6: #{tpu_custom_call.1} parent=1 // pred_check
      _
    $region7: #{tpu_custom_call.1} parent=1 // pred_check_branch
      %21 = sbr.rel (0) target = $region9
    $region8: #{tpu_custom_call.1} parent=1 // pred_region
      %s23 = ssub.s32 16, 16
      %24 = vsyncadd [#allocation3], %s23
      %s26 = sshll.u32 [#allocation2], 4
      %s27 = int_to_ptr.vmem [resolvable:$true] %s26
      %29 = dma.hbm_to_vmem [thread:$0]  %s1, 16, %s27, [#allocation3]
    $region9: #{tpu_custom_call.1} parent=1 // pred_fallthru
      _
    // Predicated region
    $region10: #{tpu_custom_call.1} parent=1 // pred_check
      _
    $region11: #{tpu_custom_call.1} parent=1 // pred_check_branch
      %31 = sbr.rel (0) target = $region13
    $region12: #{tpu_custom_call.1} parent=1 // pred_region
      %s33 = ssub.s32 1024, 1024
      %34 = vsyncadd [#allocation6], %s33
      %s35 = sshll.u32 [#allocation5], 4
      %s36 = int_to_ptr.vmem [resolvable:$true] %s35
      %41 = dma.hbm_to_vmem [thread:$0]  %s2, 1024, %s36, [#allocation6], 64, 64, 4
    $region13: #{tpu_custom_call.1} parent=1 // pred_fallthru
      _
    // Predicated region
    $region14: #{tpu_custom_call.1} parent=1 // pred_check
      _
    $region15: #{tpu_custom_call.1} parent=1 // pred_check_branch
      %43 = sbr.rel (0) target = $region17
    $region16: #{tpu_custom_call.1} parent=1 // pred_region
      %s45 = ssub.s32 16, 16
      %46 = vsyncadd [#allocation6], %s45
      %s48 = sshll.u32 [#allocation7], 4
      %s49 = int_to_ptr.vmem [resolvable:$true] %s48
      %51 = dma.hbm_to_vmem [thread:$0]  %s3, 16, %s49, [#allocation6]
    $region17: #{tpu_custom_call.1} parent=1 // pred_fallthru
      _
    // Predicated region
    $region18: #{tpu_custom_call.1} parent=1 // pred_check
      _
    $region19: #{tpu_custom_call.1} parent=1 // pred_check_branch
      %53 = sbr.rel (0) target = $region21
    $region20: #{tpu_custom_call.1} parent=1 // pred_region
      %s55 = ssub.s32 2048, 2048
      %56 = vsyncadd [#allocation9], %s55
      %s57 = sshll.u32 [#allocation8], 4
      %s58 = int_to_ptr.vmem [resolvable:$true] %s57
      %63 = dma.hbm_to_vmem [thread:$0]  %s4, 2048, %s58, [#allocation9], 128, 128, 8
    $region21: #{tpu_custom_call.1} parent=1 // pred_fallthru
      _
    // Predicated region
    $region22: #{tpu_custom_call.1} parent=1 // pred_check
      _
    $region23: #{tpu_custom_call.1} parent=1 // pred_check_branch
      %65 = sbr.rel (0) target = $region25
    $region24: #{tpu_custom_call.1} parent=1 // pred_region
      _
    $region25: #{tpu_custom_call.1} parent=1 // pred_fallthru
      _
    // Predicated region
    $region26: #{tpu_custom_call.1} parent=1 // pred_check
      _
    $region27: #{tpu_custom_call.1} parent=1 // pred_check_branch
      %67 = sbr.rel (0) target = $region29
    $region28: #{tpu_custom_call.1} parent=1 // pred_region
      %68 = dma.done [#allocation3], 16
    $region29: #{tpu_custom_call.1} parent=1 // pred_fallthru
      _
    // Predicated region
    $region30: #{tpu_custom_call.1} parent=1 // pred_check
      _
    $region31: #{tpu_custom_call.1} parent=1 // pred_check_branch
      %70 = sbr.rel (0) target = $region33
    $region32: #{tpu_custom_call.1} parent=1 // pred_region
      %71 = dma.done [#allocation6], 1024
    $region33: #{tpu_custom_call.1} parent=1 // pred_fallthru
      _
    // Predicated region
    $region34: #{tpu_custom_call.1} parent=1 // pred_check
      _
    $region35: #{tpu_custom_call.1} parent=1 // pred_check_branch
      %73 = sbr.rel (0) target = $region37
    $region36: #{tpu_custom_call.1} parent=1 // pred_region
      %74 = dma.done [#allocation6], 16
    $region37: #{tpu_custom_call.1} parent=1 // pred_fallthru
      _
    // Predicated region
    $region38: #{tpu_custom_call.1} parent=1 // pred_check
      _
    $region39: #{tpu_custom_call.1} parent=1 // pred_check_branch
      %76 = sbr.rel (0) target = $region41
    $region40: #{tpu_custom_call.1} parent=1 // pred_region
      %77 = dma.done [#allocation9], 2048
    $region41: #{tpu_custom_call.1} parent=1 // pred_fallthru
      _
    %v79 = vld [vmem:[%s0] sm:$0xff]
    %v80 = vpack.c.bf16 %v79, %v79
    %v81 = vld [vmem:[#allocation5] sm:$0xf]
    %v82 = vld [vmem:[#allocation5 + $0x4] sm:$0xf]
    %v83 = vld [vmem:[#allocation5 + $0x8] sm:$0xf]
    %v84 = vld [vmem:[#allocation5 + $0xc] sm:$0xf]
    %v85 = vld [vmem:[#allocation5 + $0x10] sm:$0xf]
    %v86 = vld [vmem:[#allocation5 + $0x14] sm:$0xf]
    %v87 = vld [vmem:[#allocation5 + $0x18] sm:$0xf]
    %v88 = vld [vmem:[#allocation5 + $0x1c] sm:$0xf]
    %v89 = vld [vmem:[#allocation5 + $0x20] sm:$0xf]
    %v90 = vld [vmem:[#allocation5 + $0x24] sm:$0xf]
    %v91 = vld [vmem:[#allocation5 + $0x28] sm:$0xf]
    %v92 = vld [vmem:[#allocation5 + $0x2c] sm:$0xf]
    %v93 = vld [vmem:[#allocation5 + $0x30] sm:$0xf]
    %v94 = vld [vmem:[#allocation5 + $0x34] sm:$0xf]
    %v95 = vld [vmem:[#allocation5 + $0x38] sm:$0xf]
    %v96 = vld [vmem:[#allocation5 + $0x3c] sm:$0xf]
    %v97 = vld [vmem:[#allocation7] sm:$0x1]
    %v99 = vlaneseq
    %v100 = vshrl.u32 %v99, 7
    %v101 = vsub.s32 0, %v100
    %v102 = vrot.slane %v97, %v101
    %v120 = vunpack.c.l.b16 %v81
    %v121 = vunpack.c.l.b16 %v82
    %v122 = vunpack.c.l.b16 %v83
    %v123 = vunpack.c.l.b16 %v84
    %v124 = vunpack.c.l.b16 %v85
    %v125 = vunpack.c.l.b16 %v86
    %v126 = vunpack.c.l.b16 %v87
    %v127 = vunpack.c.l.b16 %v88
    %v128 = vunpack.c.l.b16 %v89
    %v129 = vunpack.c.l.b16 %v90
    %v130 = vunpack.c.l.b16 %v91
    %v131 = vunpack.c.l.b16 %v92
    %v132 = vunpack.c.l.b16 %v93
    %v133 = vunpack.c.l.b16 %v94
    %v134 = vunpack.c.l.b16 %v95
    %v135 = vunpack.c.l.b16 %v96
    %v136 = vpack.c.b16 %v121, %v120
    %v137 = vpack.c.b16 %v123, %v122
    %v138 = vpack.c.b16 %v125, %v124
    %v139 = vpack.c.b16 %v127, %v126
    %v140 = vpack.c.b16 %v129, %v128
    %v141 = vpack.c.b16 %v131, %v130
    %v142 = vpack.c.b16 %v133, %v132
    %v143 = vpack.c.b16 %v135, %v134
    %152 = vmatprep.subr.bf16.mxu0 0
    %153 = vmatpush1.bf16.msra.mxu0 %v143
    %154 = vmatprep.subr.bf16.mxu0 0
    %155 = vmatpush1.bf16.msra.mxu0 %v142
    %156 = vmatprep.subr.bf16.mxu0 0
    %157 = vmatpush1.bf16.msra.mxu0 %v141
    %158 = vmatprep.subr.bf16.mxu0 0
    %159 = vmatpush1.bf16.msra.mxu0 %v140
    %160 = vmatprep.subr.bf16.mxu0 0
    %161 = vmatpush1.bf16.msra.mxu0 %v139
    %162 = vmatprep.subr.bf16.mxu0 0
    %163 = vmatpush1.bf16.msra.mxu0 %v138
    %164 = vmatprep.subr.bf16.mxu0 0
    %165 = vmatpush1.bf16.msra.mxu0 %v137
    %166 = vmatprep.subr.bf16.mxu0 0
    %167 = vmatpush1.bf16.msra.mxu0 %v136
    %168 = vmatprep.subr.bf16.mxu0 0
    %169 = vmatpush2.bf16.msra.mxu0 0
    %170 = vmatprep.subr.bf16.mxu0 0
    %171 = vmatpush2.bf16.msra.mxu0 0
    %172 = vmatprep.subr.bf16.mxu0 0
    %173 = vmatpush2.bf16.msra.mxu0 0
    %174 = vmatprep.subr.bf16.mxu0 0
    %175 = vmatpush2.bf16.msra.mxu0 0
    %176 = vmatprep.subr.bf16.mxu0 0
    %177 = vmatpush2.bf16.msra.mxu0 0
    %178 = vmatprep.subr.bf16.mxu0 0
    %179 = vmatpush2.bf16.msra.mxu0 0
    %180 = vmatprep.subr.bf16.mxu0 0
    %181 = vmatpush2.bf16.msra.mxu0 0
    %182 = vmatprep.subr.bf16.mxu0 0
    %183 = vmatpush2.bf16.msra.mxu0 0
    %184 = vmatprep.mubr.bf16.mxu0 0
    %185 = vmatmul.mubr.bf16.gmra.mxu0 %v80
    %v186 = vpop.f32.mrf.mxu0
    %v187 = vadd.f32 %v102, %v186
    %v188 = vpop.f32.mrf.mxu0
    %v189 = vpop.f32.mrf.mxu0
    %v190 = vpop.f32.mrf.mxu0
    %191 = vdwg.mxu0
    %v192 = vmax.f32 %v187, 0.0
    %v193 = vpack.c.bf16 %v192, %v192
    %v194 = vld [vmem:[#allocation8] sm:$0xff]
    %v195 = vld [vmem:[#allocation8 + $0x8] sm:$0xff]
    %v196 = vld [vmem:[#allocation8 + $0x10] sm:$0xff]
    %v197 = vld [vmem:[#allocation8 + $0x18] sm:$0xff]
    %v198 = vld [vmem:[#allocation8 + $0x20] sm:$0xff]
    %v199 = vld [vmem:[#allocation8 + $0x28] sm:$0xff]
    %v200 = vld [vmem:[#allocation8 + $0x30] sm:$0xff]
    %v201 = vld [vmem:[#allocation8 + $0x38] sm:$0xff]
    %v202 = vld [vmem:[#allocation8 + $0x40] sm:$0xff]
    %v203 = vld [vmem:[#allocation8 + $0x48] sm:$0xff]
    %v204 = vld [vmem:[#allocation8 + $0x50] sm:$0xff]
    %v205 = vld [vmem:[#allocation8 + $0x58] sm:$0xff]
    %v206 = vld [vmem:[#allocation8 + $0x60] sm:$0xff]
    %v207 = vld [vmem:[#allocation8 + $0x68] sm:$0xff]
    %v208 = vld [vmem:[#allocation8 + $0x70] sm:$0xff]
    %v209 = vld [vmem:[#allocation8 + $0x78] sm:$0xff]
    %v210 = vld [vmem:[%s5] sm:$0x3]
    %v212 = vlaneseq
    %v213 = vshrl.u32 %v212, 7
    %v214 = vsub.s32 0, %v213
    %v215 = vrot.slane %v210, %v214
    %v216 = vlaneseq
    %v217 = vshrl.u32 %v216, 7
    %v218 = vsub.s32 1, %v217
    %v219 = vrot.slane %v210, %v218
    %v238 = vunpack.c.l.b16 %v194
    %v239 = vunpack.c.h.b16 %v194
    %v240 = vunpack.c.l.b16 %v195
    %v241 = vunpack.c.h.b16 %v195
    %v242 = vunpack.c.l.b16 %v196
    %v243 = vunpack.c.h.b16 %v196
    %v244 = vunpack.c.l.b16 %v197
    %v245 = vunpack.c.h.b16 %v197
    %v246 = vunpack.c.l.b16 %v198
    %v247 = vunpack.c.h.b16 %v198
    %v248 = vunpack.c.l.b16 %v199
    %v249 = vunpack.c.h.b16 %v199
    %v250 = vunpack.c.l.b16 %v200
    %v251 = vunpack.c.h.b16 %v200
    %v252 = vunpack.c.l.b16 %v201
    %v253 = vunpack.c.h.b16 %v201
    %v254 = vunpack.c.l.b16 %v202
    %v255 = vunpack.c.h.b16 %v202
    %v256 = vunpack.c.l.b16 %v203
    %v257 = vunpack.c.h.b16 %v203
    %v258 = vunpack.c.l.b16 %v204
    %v259 = vunpack.c.h.b16 %v204
    %v260 = vunpack.c.l.b16 %v205
    %v261 = vunpack.c.h.b16 %v205
    %v262 = vunpack.c.l.b16 %v206
    %v263 = vunpack.c.h.b16 %v206
    %v264 = vunpack.c.l.b16 %v207
    %v265 = vunpack.c.h.b16 %v207
    %v266 = vunpack.c.l.b16 %v208
    %v267 = vunpack.c.h.b16 %v208
    %v268 = vunpack.c.l.b16 %v209
    %v269 = vunpack.c.h.b16 %v209
    %v270 = vpack.c.b16 %v240, %v238
    %v271 = vpack.c.b16 %v241, %v239
    %v272 = vpack.c.b16 %v244, %v242
    %v273 = vpack.c.b16 %v245, %v243
    %v274 = vpack.c.b16 %v248, %v246
    %v275 = vpack.c.b16 %v249, %v247
    %v276 = vpack.c.b16 %v252, %v250
    %v277 = vpack.c.b16 %v253, %v251
    %v278 = vpack.c.b16 %v256, %v254
    %v279 = vpack.c.b16 %v257, %v255
    %v280 = vpack.c.b16 %v260, %v258
    %v281 = vpack.c.b16 %v261, %v259
    %v282 = vpack.c.b16 %v264, %v262
    %v283 = vpack.c.b16 %v265, %v263
    %v284 = vpack.c.b16 %v268, %v266
    %v285 = vpack.c.b16 %v269, %v267
    %302 = vmatprep.subr.bf16.mxu0 %v285
    %303 = vmatpush1.bf16.msra.mxu0 %v284
    %304 = vmatprep.subr.bf16.mxu0 %v283
    %305 = vmatpush1.bf16.msra.mxu0 %v282
    %306 = vmatprep.subr.bf16.mxu0 %v281
    %307 = vmatpush1.bf16.msra.mxu0 %v280
    %308 = vmatprep.subr.bf16.mxu0 %v279
    %309 = vmatpush1.bf16.msra.mxu0 %v278
    %310 = vmatprep.subr.bf16.mxu0 %v277
    %311 = vmatpush1.bf16.msra.mxu0 %v276
    %312 = vmatprep.subr.bf16.mxu0 %v275
    %313 = vmatpush1.bf16.msra.mxu0 %v274
    %314 = vmatprep.subr.bf16.mxu0 %v273
    %315 = vmatpush1.bf16.msra.mxu0 %v272
    %316 = vmatprep.subr.bf16.mxu0 %v271
    %317 = vmatpush1.bf16.msra.mxu0 %v270
    %318 = vmatprep.subr.bf16.mxu0 0
    %319 = vmatpush2.bf16.msra.mxu0 0
    %320 = vmatprep.subr.bf16.mxu0 0
    %321 = vmatpush2.bf16.msra.mxu0 0
    %322 = vmatprep.subr.bf16.mxu0 0
    %323 = vmatpush2.bf16.msra.mxu0 0
    %324 = vmatprep.subr.bf16.mxu0 0
    %325 = vmatpush2.bf16.msra.mxu0 0
    %326 = vmatprep.subr.bf16.mxu0 0
    %327 = vmatpush2.bf16.msra.mxu0 0
    %328 = vmatprep.subr.bf16.mxu0 0
    %329 = vmatpush2.bf16.msra.mxu0 0
    %330 = vmatprep.subr.bf16.mxu0 0
    %331 = vmatpush2.bf16.msra.mxu0 0
    %332 = vmatprep.subr.bf16.mxu0 0
    %333 = vmatpush2.bf16.msra.mxu0 0
    %334 = vmatprep.mubr.bf16.mxu0 0
    %335 = vmatmul.mubr.bf16.gmra.mxu0 %v193
    %v336 = vpop.f32.mrf.mxu0
    %v337 = vadd.f32 %v215, %v336
    %v338 = vpop.f32.mrf.mxu0
    %v339 = vadd.f32 %v219, %v338
    %v340 = vpop.f32.mrf.mxu0
    %v341 = vpop.f32.mrf.mxu0
    %342 = vdwg.mxu0
    %v343 = vtanh.pop %v337
    %v344 = vmul.f32 %v343, 0.5
    %345 = vmatprep.subr.mxu0 0.0
    %346 = vmatpush1.xpose.msra.mxu0 0.0
    %347 = vmatprep.subr.mxu0 0.0
    %348 = vmatpush1.xpose.msra.mxu0 0.0
    %349 = vmatprep.subr.mxu0 0.0
    %350 = vmatpush1.xpose.msra.mxu0 0.0
    %351 = vmatprep.subr.mxu0 0.0
    %352 = vmatpush1.xpose.msra.mxu0 0.0
    %353 = vmatprep.subr.mxu0 0.0
    %354 = vmatpush1.xpose.msra.mxu0 0.0
    %355 = vmatprep.subr.mxu0 0.0
    %356 = vmatpush1.xpose.msra.mxu0 0.0
    %357 = vmatprep.subr.mxu0 0.0
    %358 = vmatpush1.xpose.msra.mxu0 0.0
    %359 = vmatprep.subr.mxu0 0.0
    %360 = vmatpush1.xpose.msra.mxu0 0.0
    %361 = vmatprep.subr.mxu0 0.0
    %362 = vmatpush1.xpose.msra.mxu0 0.0
    %363 = vmatprep.subr.mxu0 0.0
    %364 = vmatpush1.xpose.msra.mxu0 0.0
    %365 = vmatprep.subr.mxu0 0.0
    %366 = vmatpush1.xpose.msra.mxu0 0.0
    %367 = vmatprep.subr.mxu0 0.0
    %368 = vmatpush1.xpose.msra.mxu0 0.0
    %369 = vmatprep.subr.mxu0 0.0
    %370 = vmatpush1.xpose.msra.mxu0 0.0
    %371 = vmatprep.subr.mxu0 0.0
    %372 = vmatpush1.xpose.msra.mxu0 0.0
    %373 = vmatprep.subr.mxu0 0.0
    %374 = vmatpush1.xpose.msra.mxu0 0.0
    %375 = vmatprep.subr.mxu0 0.0
    %376 = vmatpush1.xpose.msra.mxu0 %v344
    %377 = vmatprep.subr.mxu0 0.0
    %378 = vmatpush2.xpose.msra.mxu0 0.0
    %379 = vmatprep.subr.mxu0 0.0
    %380 = vmatpush2.xpose.msra.mxu0 0.0
    %381 = vmatprep.subr.mxu0 0.0
    %382 = vmatpush2.xpose.msra.mxu0 0.0
    %383 = vmatprep.subr.mxu0 0.0
    %384 = vmatpush2.xpose.msra.mxu0 0.0
    %385 = vmatprep.subr.mxu0 0.0
    %386 = vmatpush2.xpose.msra.mxu0 0.0
    %387 = vmatprep.subr.mxu0 0.0
    %388 = vmatpush2.xpose.msra.mxu0 0.0
    %389 = vmatprep.subr.mxu0 0.0
    %390 = vmatpush2.xpose.msra.mxu0 0.0
    %391 = vmatprep.subr.mxu0 0.0
    %392 = vmatpush2.xpose.msra.mxu0 0.0
    %393 = vmatprep.subr.mxu0 0.0
    %394 = vmatpush2.xpose.msra.mxu0 0.0
    %395 = vmatprep.subr.mxu0 0.0
    %396 = vmatpush2.xpose.msra.mxu0 0.0
    %397 = vmatprep.subr.mxu0 0.0
    %398 = vmatpush2.xpose.msra.mxu0 0.0
    %399 = vmatprep.subr.mxu0 0.0
    %400 = vmatpush2.xpose.msra.mxu0 0.0
    %401 = vmatprep.subr.mxu0 0.0
    %402 = vmatpush2.xpose.msra.mxu0 0.0
    %403 = vmatprep.subr.mxu0 0.0
    %404 = vmatpush2.xpose.msra.mxu0 0.0
    %405 = vmatprep.subr.mxu0 0.0
    %406 = vmatpush2.xpose.msra.mxu0 0.0
    %407 = vmatprep.subr.mxu0 0.0
    %408 = vmatpush2.xpose.msra.mxu0 0.0
    %409 = vmatprep.mubr.f32.mxu0 0.0
    %410 = vmatmul.mubr.f32.gmra.mxu0 1.0
    %v411 = vpop.f32.mrf.mxu0
    %v412 = vadd.f32 0.0, %v411
    %v413 = vpop.f32.mrf.mxu0
    %414 = vdwg.mxu0
    %v415 = vld [vmem:[#allocation2] sm:$0x1]
    %v416 = vadd.f32 %v415, %v412
    %vm417 = vcmask 57344
    %418 = vst.msk [vmem:[#allocation11] sm:$0x1] %vm417, %v416
    %v419 = vadd.f32 %v79, %v339
    %v420 = vmul.f32 %v344, 1.442695
    %v421 = vpow.pop %v420
    %v422 = vmul.f32 %v419, %v421
    %423 = vst [vmem:[#allocation10] sm:$0xff] %v422
    // Predicated region
    $region42: #{tpu_custom_call.1} parent=1 // pred_check
      _
    $region43: #{tpu_custom_call.1} parent=1 // pred_check_branch
      %425 = sbr.rel (0) target = $region45
    $region44: #{tpu_custom_call.1} parent=1 // pred_region
      %s427 = ssub.s32 128, 128
      %428 = vsyncadd [#allocation4], %s427
      %s430 = sshll.u32 [#allocation10], 4
      %s431 = int_to_ptr.vmem [resolvable:$true] %s430
      %433 = dma.vmem_to_hbm [thread:$0]  %s431, 128, %s6, [#allocation4]
    $region45: #{tpu_custom_call.1} parent=1 // pred_fallthru
      _
    // Predicated region
    $region46: #{tpu_custom_call.1} parent=1 // pred_check
      _
    $region47: #{tpu_custom_call.1} parent=1 // pred_check_branch
      %435 = sbr.rel (0) target = $region49
    $region48: #{tpu_custom_call.1} parent=1 // pred_region
      %s437 = ssub.s32 16, 16
      %438 = vsyncadd [#allocation12], %s437
      %s440 = sshll.u32 [#allocation11], 4
      %s441 = int_to_ptr.vmem [resolvable:$true] %s440
      %443 = dma.vmem_to_hbm [thread:$0]  %s441, 16, %s7, [#allocation12]
    $region49: #{tpu_custom_call.1} parent=1 // pred_fallthru
      _
    // Predicated region
    $region50: #{tpu_custom_call.1} parent=1 // pred_check
      _
    $region51: #{tpu_custom_call.1} parent=1 // pred_check_branch
      %445 = sbr.rel (0) target = $region53
    $region52: #{tpu_custom_call.1} parent=1 // pred_region
      %446 = dma.done [#allocation4], 128
    $region53: #{tpu_custom_call.1} parent=1 // pred_fallthru
      _
    // Predicated region
    $region54: #{tpu_custom_call.1} parent=1 // pred_check
      _
    $region55: #{tpu_custom_call.1} parent=1 // pred_check_branch
      %448 = sbr.rel (0) target = $region57
    $region56: #{tpu_custom_call.1} parent=1 // pred_region
      %449 = dma.done [#allocation12], 16
    $region57: #{tpu_custom_call.1} parent=1 // pred_fallthru
      _
    %450 = vsyncpa [#allocation3], 1
    %451 = vsyncpa [#allocation6], 1
    %452 = vsyncpa [#allocation9], 1
    %453 = vsyncpa [#allocation4], 1
    %454 = vsyncpa [#allocation12], 1

</llo_original>
